<compile_context>
chip_gen: v5e
topology: v5e:2x2
jax: 0.10.0
libtpu: 0.0.40
codegen_flags: <defaults>
</compile_context>

<pallas_src>
import jax
import jax.numpy as jnp
from jax.experimental import pallas as pl
from jax.experimental.pallas import tpu as pltpu

FAKE_TOKEN = 1              # stands in for the tokenized fake/padded context text "0"
LANE = 128                  # TPU lane width: keep sequence axes lane-dense
_PALLAS_MIN_BYTES = 1 << 20  # below ~1 MiB of traffic the custom call is overhead-bound


def _round_up(x, m):
    return ((x + m - 1) // m) * m


def _cdiv(a, b):
    return -(-a // b)


def _vmem_capacity_bytes():
    try:
        return int(pltpu.get_tpu_info().vmem_capacity_bytes)
    except Exception:
        return 64 << 20      # conservative default (v7x-sized part)


def _num_tensorcores():
    """2 for multi-TensorCore parts (v4 / v5p / v7x), else 1 (v5e / v6e)."""
    try:
        kind = jax.devices()[0].device_kind.lower()
    except Exception:
        return 1
    if "v7" in kind or "v4" in kind or "v5p" in kind:
        return 2
    return 1


def _plan_tiling(B, C, Lc, Lq, block_rows=None):
    """Pick (B_pad, rows-per-step, grid length, vmem_limit) for this part.

    The kernel is pure HBM streaming, so the goal is ~1-4 MiB of output per
    grid step, an even grid on 2-TC parts, and no forced split on 1-TC parts.
    """
    L = Lc + Lq
    # Double-buffered VMEM bytes per batch row, including the sublane / lane
    # padding of the small tiles ((1,Lq) -> (8,Lq) and (C,1) -> (C,128)).
    row_bytes_db = 2 * 4 * (C * Lc + 8 * Lq + C * LANE + C * L)

    vmem_cap = _vmem_capacity_bytes()
    n_cores = _num_tensorcores()

    if block_rows is not None:
        tb = max(1, int(block_rows))
        grid = max(1, _cdiv(B, tb))
    else:
        budget = min(16 << 20, vmem_cap // 4)            # double-buffered tile budget
        tb_cap = max(1, budget // row_bytes_db)
        grid = max(1, _cdiv(B, tb_cap))                   # fewest steps within budget
        if n_cores >= 2:
            if grid == 1 and B >= 16:
                grid = 2                                  # keep both TCs busy
            elif grid > 1 and grid % 2 == 1:
                grid += 1                                 # even grid: rows re-balance,
                                                          # tb shrinks, wall drops
        tb = _cdiv(B, grid)                               # balanced rows per step

    B_pad = tb * grid
    footprint = row_bytes_db * tb
    vmem_limit = int(min(32 << 20, vmem_cap // 2, footprint + (8 << 20)))
    vmem_limit = int(max(vmem_limit, footprint + (2 << 20)))
    return B_pad, tb, grid, vmem_limit


def _cross_attn_concat_kernel(mask_ref, q_ref, ctx_ref, out_ref):
    """Fuse context || question token ids for a tile of TB batch rows.

    mask_ref: VMEM [TB, C, 1] int32   -- 1 where the context slot is fake/padded
    q_ref   : VMEM [TB, 1, Lq] int32  -- question token ids
    ctx_ref : VMEM [TB, C, Lc] int32  -- context token ids (pos + negs [+ pad])
    out_ref : VMEM [TB, C, Lc+Lq] int32 -- fused cross-attention input ids
    """
    TB, C, Lc = ctx_ref.shape
    Lq = q_ref.shape[2]

    # Padded-context slots get FAKE_TOKEN across all Lc lanes.  The mask comes
    # from the wrapper (same array that becomes the ctx_mask output), so there
    # is no in-kernel iota/compare and no per-step scalar DMA besides this
    # lane-broadcastable (TB,C,1) tile.
    fake = mask_ref[...] != 0                                    # (TB, C, 1)
    out_ref[:, :, :Lc] = jnp.where(fake, jnp.int32(FAKE_TOKEN), ctx_ref[...])

    # Broadcast the question to every context slot of the row and write the
    # second region directly (no in-kernel concatenate / lane shuffles).
    out_ref[:, :, Lc:] = jnp.broadcast_to(q_ref[...], (TB, C, Lq))


def _fuse_xla(q_ids, ctx_ids, fake_mask):
    """Plain-XLA reference / small-batch fallback path."""
    B, C, Lc = ctx_ids.shape
    Lq = q_ids.shape[2]
    fused_ctx = jnp.where(fake_mask[:, :, None], jnp.int32(FAKE_TOKEN), ctx_ids)
    q_b = jnp.broadcast_to(q_ids, (B, C, Lq))
    return jnp.concatenate([fused_ctx, q_b], axis=-1)


def dpr_cross_attention_transform(q_ids, ctx_ids, n_real, *, use_pallas=None,
                                  block_rows=None):
    """JAX wrapper mimicking DPRCrossAttentionTransform.forward outputs.

    q_ids  : [B, 1, Lq] int32  -- pre-"tokenized" questions
    ctx_ids: [B, C, Lc] int32  -- pre-"tokenized" contexts (C = 1 pos + num_negative)
    n_real : [B]        int32  -- real contexts per row (rest are padded/fake)
    """
    B, C, Lc = ctx_ids.shape
    Bq, one, Lq = q_ids.shape
    assert Bq == B and one == 1, "q_ids must be [B, 1, Lq]"

    # Keep both region writes full-lane: pad sequence axes up to 128 multiples
    # (pad token id 0, matching tokenizer padding).  The Lc split point of the
    # fused output moves to the padded length.
    Lc_p, Lq_p = _round_up(Lc, LANE), _round_up(Lq, LANE)
    if Lc_p != Lc:
        ctx_ids = jnp.pad(ctx_ids, ((0, 0), (0, 0), (0, Lc_p - Lc)))
    if Lq_p != Lq:
        q_ids = jnp.pad(q_ids, ((0, 0), (0, 0), (0, Lq_p - Lq)))
    Lc, Lq = Lc_p, Lq_p
    L = Lc + Lq

    q_ids = q_ids.astype(jnp.int32)
    ctx_ids = ctx_ids.astype(jnp.int32)

    # Single source of truth for the fake-slot mask (also the ctx_mask output).
    n = jnp.clip(n_real.astype(jnp.int32), 0, C)
    fake_mask = jnp.arange(C, dtype=jnp.int32)[None, :] >= n[:, None]   # (B, C) bool

    # Tiny batches: the whole call is fixed-overhead-bound; do it in plain XLA.
    total_bytes = 4 * (B * C * Lc + B * Lq + B * C + B * C * L)
    if use_pallas is None:
        use_pallas = total_bytes >= _PALLAS_MIN_BYTES

    if not use_pallas:
        fused = _fuse_xla(q_ids, ctx_ids, fake_mask)
    else:
        B_pad, tb, grid, vmem_limit = _plan_tiling(B, C, Lc, Lq, block_rows)
        if B_pad != B:                        # awkward B: pad rows (all-fake), slice after
            pad = B_pad - B
            q_p = jnp.pad(q_ids, ((0, pad), (0, 0), (0, 0)))
            ctx_p = jnp.pad(ctx_ids, ((0, pad), (0, 0), (0, 0)))
            fake_p = jnp.pad(fake_mask, ((0, pad), (0, 0)), constant_values=True)
        else:
            q_p, ctx_p, fake_p = q_ids, ctx_ids, fake_mask
        mask32 = fake_p.astype(jnp.int32)[:, :, None]                    # (B_pad, C, 1)

        fused_pad = pl.pallas_call(
            _cross_attn_concat_kernel,
            out_shape=jax.ShapeDtypeStruct((B_pad, C, L), jnp.int32),
            grid=(grid,),
            in_specs=[
                pl.BlockSpec((tb, C, 1), lambda i: (i, 0, 0)),
                pl.BlockSpec((tb, 1, Lq), lambda i: (i, 0, 0)),
                pl.BlockSpec((tb, C, Lc), lambda i: (i, 0, 0)),
            ],
            out_specs=pl.BlockSpec((tb, C, L), lambda i: (i, 0, 0)),
            compiler_params=pltpu.CompilerParams(
                dimension_semantics=("parallel",),
                vmem_limit_bytes=vmem_limit,
            ),
        )(mask32, q_p, ctx_p)
        fused = fused_pad[:B]

    # Glue (matches the dict-style outputs of the transform family):
    #   - text_transform({'text': all_ctxs, 'label': all_labels})
    #     -> token_ids [B*C, L], label_ids [B] (one '0' label per row)
    #   - ctx_mask / pos_ctx_indices as in the DPRTransform family.
    token_ids = fused.reshape(B * C, L)
    label_ids = jnp.zeros((B,), dtype=jnp.int32)
    ctx_mask = fake_mask.reshape(B * C)
    pos_ctx_indices = jnp.arange(B, dtype=jnp.int32) * C
    return {
        "token_ids": token_ids,
        "label_ids": label_ids,
        "ctx_mask": ctx_mask,
        "pos_ctx_indices": pos_ctx_indices,
    }


if __name__ == "__main__":
    # TODO(synk): string tokenization, ujson parsing and np.random sampling of
    # replacement negative contexts have no Pallas equivalent; token ids are
    # synthesized here and missing negatives are padded with FAKE_TOKEN.
    B = 16                # batch rows
    NUM_POSITIVE = 1
    NUM_NEGATIVE = 7
    C = NUM_POSITIVE + NUM_NEGATIVE   # 8 contexts per row
    Lq = 128              # question length  (lane-dense)
    Lc = 128              # context length   (lane-dense; L = 256)

    key = jax.random.PRNGKey(0)
    kq, kc = jax.random.split(key)
    q_ids = jax.random.randint(kq, (B, 1, Lq), 2, 30000, dtype=jnp.int32)
    ctx_ids = jax.random.randint(kc, (B, C, Lc), 2, 30000, dtype=jnp.int32)
    # even rows have all 7 negatives; odd rows only 4 -> 3 padded contexts
    n_real = jnp.where(jnp.arange(B) % 2 == 0, C, 5).astype(jnp.int32)

    # The demo batch is below the auto threshold, so force the Pallas path to
    # exercise the kernel (production-size batches take it automatically).
    out = dpr_cross_attention_transform(q_ids, ctx_ids, n_real, use_pallas=True)
    jax.block_until_ready(out)

    # Correctness: compare against the plain-XLA reference path.
    fake_ref = jnp.arange(C, dtype=jnp.int32)[None, :] >= n_real[:, None]
    ref = _fuse_xla(q_ids, ctx_ids, fake_ref)
    tok = out["token_ids"].reshape(B, C, Lc + Lq)
    assert bool(jnp.array_equal(tok, ref))

    # Light sanity checks of the forward semantics.
    assert bool(jnp.all(tok[:, :, Lc:] == jnp.broadcast_to(q_ids, (B, C, Lq))))
    assert bool(jnp.all(tok[1, 5:, :Lc] == FAKE_TOKEN))
    assert bool(jnp.all(tok[1, :5, :Lc] == ctx_ids[1, :5]))
    assert bool(jnp.all(tok[0, :, :Lc] == ctx_ids[0]))
    mask = out["ctx_mask"].reshape(B, C)
    assert bool(jnp.all(mask[1, 5:])) and not bool(jnp.any(mask[1, :5]))
    assert not bool(jnp.any(mask[0]))
    assert out["pos_ctx_indices"][3] == 3 * C

    print("KERNEL_OK")
</pallas_src>

<mosaic_0001>
module attributes {stable_mosaic.version = 11 : i64} {
  func.func @_cross_attn_concat_kernel(%arg0: i32, %arg1: memref<16x8x1xi32, #tpu.memory_space<vmem>>, %arg2: memref<16x1x128xi32, #tpu.memory_space<vmem>>, %arg3: memref<16x8x128xi32, #tpu.memory_space<vmem>>, %arg4: memref<16x8x256xi32, #tpu.memory_space<vmem>>) attributes {dimension_semantics = [#tpu.dimension_semantics<parallel>], iteration_bounds = array<i64: 1>, scalar_prefetch = 0 : i64, scratch_operands = 0 : i64, tpu.core_type = #tpu.core_type<tc>, window_params = [{transform_indices = @transform_0, window_bounds = array<i64: 16, 8, 1>}, {transform_indices = @transform_1, window_bounds = array<i64: 16, 1, 128>}, {transform_indices = @transform_2, window_bounds = array<i64: 16, 8, 128>}, {transform_indices = @transform_3, window_bounds = array<i64: 16, 8, 256>}]} {
    %c0 = arith.constant 0 : index
    %c0_0 = arith.constant 0 : index
    %c0_1 = arith.constant 0 : index
    %0 = vector.load %arg1[%c0, %c0_0, %c0_1] : memref<16x8x1xi32, #tpu.memory_space<vmem>>, vector<16x8x1xi32>
    %c0_i32 = arith.constant 0 : i32
    %1 = vector.broadcast %c0_i32 : i32 to vector<16x8x1xi32>
    %2 = arith.cmpi ne, %0, %1 : vector<16x8x1xi32>
    %c0_2 = arith.constant 0 : index
    %c0_3 = arith.constant 0 : index
    %c0_4 = arith.constant 0 : index
    %3 = vector.load %arg3[%c0_2, %c0_3, %c0_4] : memref<16x8x128xi32, #tpu.memory_space<vmem>>, vector<16x8x128xi32>
    %c1_i32 = arith.constant 1 : i32
    %4 = vector.shape_cast %2 : vector<16x8x1xi1> to vector<16x8x1xi1>
    %5 = vector.broadcast %4 : vector<16x8x1xi1> to vector<16x8x128xi1>
    %6 = vector.broadcast %c1_i32 : i32 to vector<16x8x128xi32>
    %7 = arith.select %5, %6, %3 : vector<16x8x128xi1>, vector<16x8x128xi32>
    %c0_5 = arith.constant 0 : index
    %c0_6 = arith.constant 0 : index
    %c0_7 = arith.constant 0 : index
    %8 = vector.load %arg4[%c0_5, %c0_6, %c0_7] : memref<16x8x256xi32, #tpu.memory_space<vmem>>, vector<16x8x128xi32>
    tpu.vector_store %arg4[%c0_5, %c0_6, %c0_7], %7 {strides = array<i32>} : memref<16x8x256xi32, #tpu.memory_space<vmem>>, vector<16x8x128xi32>,
    %c0_8 = arith.constant 0 : index
    %c0_9 = arith.constant 0 : index
    %c0_10 = arith.constant 0 : index
    %9 = vector.load %arg2[%c0_8, %c0_9, %c0_10] : memref<16x1x128xi32, #tpu.memory_space<vmem>>, vector<16x1x128xi32>
    %10 = vector.shape_cast %9 : vector<16x1x128xi32> to vector<16x1x128xi32>
    %11 = vector.broadcast %10 : vector<16x1x128xi32> to vector<16x8x128xi32>
    %c0_11 = arith.constant 0 : index
    %c0_12 = arith.constant 0 : index
    %c128 = arith.constant 128 : index
    %12 = vector.load %arg4[%c0_11, %c0_12, %c128] : memref<16x8x256xi32, #tpu.memory_space<vmem>>, vector<16x8x128xi32>
    tpu.vector_store %arg4[%c0_11, %c0_12, %c128], %11 {strides = array<i32>} : memref<16x8x256xi32, #tpu.memory_space<vmem>>, vector<16x8x128xi32>,
    return
  }
  func.func @transform_0(%arg0: i32) -> (i32, i32, i32) {
    %c0_i32 = arith.constant 0 : i32
    %c0_i32_0 = arith.constant 0 : i32
    %c0_i32_1 = arith.constant 0 : i32
    return %arg0, %c0_i32, %c0_i32_0 : i32, i32, i32
  }
  func.func @transform_1(%arg0: i32) -> (i32, i32, i32) {
    %c0_i32 = arith.constant 0 : i32
    %c0_i32_0 = arith.constant 0 : i32
    %c0_i32_1 = arith.constant 0 : i32
    return %arg0, %c0_i32, %c0_i32_0 : i32, i32, i32
  }
  func.func @transform_2(%arg0: i32) -> (i32, i32, i32) {
    %c0_i32 = arith.constant 0 : i32
    %c0_i32_0 = arith.constant 0 : i32
    %c0_i32_1 = arith.constant 0 : i32
    return %arg0, %c0_i32, %c0_i32_0 : i32, i32, i32
  }
  func.func @transform_3(%arg0: i32) -> (i32, i32, i32) {
    %c0_i32 = arith.constant 0 : i32
    %c0_i32_0 = arith.constant 0 : i32
    %c0_i32_1 = arith.constant 0 : i32
    return %arg0, %c0_i32, %c0_i32_0 : i32, i32, i32
  }
}

</mosaic_0001>

<llo_original>
// kernel: tpu_custom_call.1
$region0: #{tpu_custom_call.1}
  #allocation0 [shape = 'u32[]', space=smem, size = 0x4, offset = 0x4, fixed_abs, tag = 'smem constant byte address 0x4 - core index']
  #allocation1 [shape = 'u32[72,128]{1,0:T(1,128)}', space=vmem, size = 0x9000, scoped, tag = 'internal scratch']
  %s0 = inlined_call_operand.vmem [shape: s32[16,8,1], index: 0, kind: input, shape index: {}]
  %s1 = inlined_call_operand.hbm [shape: s32[16,1,128], index: 1, kind: input, shape index: {}]
  %s2 = inlined_call_operand.vmem [shape: s32[16,8,128], index: 2, kind: input, shape index: {}]
  %s3 = inlined_call_operand.hbm [shape: s32[16,8,256], index: 3, kind: output, shape index: {}]
  %s4 = sld [smem:[#allocation0]]
  $region26: #{tpu_custom_call.1} parent=0
    _
  %s6 = ssub.s32 1, %s4
  %s7 = scalar_select 0, %s6, %s4
  $region1: #{tpu_custom_call.1} parent=0
    #allocation2 [shape = 'u8[8192]{0}', space=vmem, size = 0x2000, scoped, tag = 'input window, operand 1, single buffered']
    #allocation3 [shape = 's32[1]{0}', space=sflag, size = 0x4, scoped, tag = 'scoped memory for tpu_custom_call.1']
    #allocation4 [shape = 's32[1]{0}', space=sflag, size = 0x4, scoped, tag = 'scoped memory for tpu_custom_call.1']
    #allocation5 [shape = 'u8[131072]{0}', space=vmem, size = 0x20000, scoped, tag = 'output window, operand 0, single buffered']
    %8 = vsyncpa [#allocation3], 0
    %9 = vsyncpa [#allocation4], 0
    // Predicated region
    $region2: #{tpu_custom_call.1} parent=1 // pred_check
      _
    $region3: #{tpu_custom_call.1} parent=1 // pred_check_branch
      %11 = sbr.rel (0) target = $region5
    $region4: #{tpu_custom_call.1} parent=1 // pred_region
      _
    $region5: #{tpu_custom_call.1} parent=1 // pred_fallthru
      _
    // Predicated region
    $region6: #{tpu_custom_call.1} parent=1 // pred_check
      _
    $region7: #{tpu_custom_call.1} parent=1 // pred_check_branch
      %13 = sbr.rel (0) target = $region9
    $region8: #{tpu_custom_call.1} parent=1 // pred_region
      %15 = vsyncadd [#allocation3], 0
      %s16 = sshll.u32 %s1, 4
      %s17 = int_to_ptr.hbm [resolvable:$true] %s16
      %s18 = sshll.u32 [#allocation2], 4
      %s19 = int_to_ptr.vmem [resolvable:$true] %s18
      %24 = dma.hbm_to_vmem [thread:$0]  %s17, 256, %s19, [#allocation3], 16, 16, 1
    $region9: #{tpu_custom_call.1} parent=1 // pred_fallthru
      _
    // Predicated region
    $region10: #{tpu_custom_call.1} parent=1 // pred_check
      _
    $region11: #{tpu_custom_call.1} parent=1 // pred_check_branch
      %26 = sbr.rel (0) target = $region13
    $region12: #{tpu_custom_call.1} parent=1 // pred_region
      _
    $region13: #{tpu_custom_call.1} parent=1 // pred_fallthru
      _
    // Predicated region
    $region14: #{tpu_custom_call.1} parent=1 // pred_check
      _
    $region15: #{tpu_custom_call.1} parent=1 // pred_check_branch
      %28 = sbr.rel (0) target = $region17
    $region16: #{tpu_custom_call.1} parent=1 // pred_region
      %30 = dma.done [#allocation3], 256
    $region17: #{tpu_custom_call.1} parent=1 // pred_fallthru
      _
    %v31 = vld [vmem:[%s0] sm:$0xff]
    %v32 = vld [vmem:[%s0 + $0x8] sm:$0xff]
    %v33 = vld [vmem:[%s0 + $0x10] sm:$0xff]
    %v34 = vld [vmem:[%s0 + $0x18] sm:$0xff]
    %v35 = vld [vmem:[%s0 + $0x20] sm:$0xff]
    %v36 = vld [vmem:[%s0 + $0x28] sm:$0xff]
    %v37 = vld [vmem:[%s0 + $0x30] sm:$0xff]
    %v38 = vld [vmem:[%s0 + $0x38] sm:$0xff]
    %v39 = vld [vmem:[%s0 + $0x40] sm:$0xff]
    %v40 = vld [vmem:[%s0 + $0x48] sm:$0xff]
    %v41 = vld [vmem:[%s0 + $0x50] sm:$0xff]
    %v42 = vld [vmem:[%s0 + $0x58] sm:$0xff]
    %v43 = vld [vmem:[%s0 + $0x60] sm:$0xff]
    %v44 = vld [vmem:[%s0 + $0x68] sm:$0xff]
    %v45 = vld [vmem:[%s0 + $0x70] sm:$0xff]
    %v46 = vld [vmem:[%s0 + $0x78] sm:$0xff]
    %vm47 = vcmp.ne.s32.totalorder %v31, 0
    %vm48 = vcmp.ne.s32.totalorder %v32, 0
    %vm49 = vcmp.ne.s32.totalorder %v33, 0
    %vm50 = vcmp.ne.s32.totalorder %v34, 0
    %vm51 = vcmp.ne.s32.totalorder %v35, 0
    %vm52 = vcmp.ne.s32.totalorder %v36, 0
    %vm53 = vcmp.ne.s32.totalorder %v37, 0
    %vm54 = vcmp.ne.s32.totalorder %v38, 0
    %vm55 = vcmp.ne.s32.totalorder %v39, 0
    %vm56 = vcmp.ne.s32.totalorder %v40, 0
    %vm57 = vcmp.ne.s32.totalorder %v41, 0
    %vm58 = vcmp.ne.s32.totalorder %v42, 0
    %vm59 = vcmp.ne.s32.totalorder %v43, 0
    %vm60 = vcmp.ne.s32.totalorder %v44, 0
    %vm61 = vcmp.ne.s32.totalorder %v45, 0
    %vm62 = vcmp.ne.s32.totalorder %v46, 0
    %v63 = vld [vmem:[%s2] sm:$0xff]
    %v64 = vld [vmem:[%s2 + $0x8] sm:$0xff]
    %v65 = vld [vmem:[%s2 + $0x10] sm:$0xff]
    %v66 = vld [vmem:[%s2 + $0x18] sm:$0xff]
    %v67 = vld [vmem:[%s2 + $0x20] sm:$0xff]
    %v68 = vld [vmem:[%s2 + $0x28] sm:$0xff]
    %v69 = vld [vmem:[%s2 + $0x30] sm:$0xff]
    %v70 = vld [vmem:[%s2 + $0x38] sm:$0xff]
    %v71 = vld [vmem:[%s2 + $0x40] sm:$0xff]
    %v72 = vld [vmem:[%s2 + $0x48] sm:$0xff]
    %v73 = vld [vmem:[%s2 + $0x50] sm:$0xff]
    %v74 = vld [vmem:[%s2 + $0x58] sm:$0xff]
    %v75 = vld [vmem:[%s2 + $0x60] sm:$0xff]
    %v76 = vld [vmem:[%s2 + $0x68] sm:$0xff]
    %v77 = vld [vmem:[%s2 + $0x70] sm:$0xff]
    %v78 = vld [vmem:[%s2 + $0x78] sm:$0xff]
    %v79 = vsel %vm47, 1, 0
    %v80 = vsel %vm48, 1, 0
    %v81 = vsel %vm49, 1, 0
    %v82 = vsel %vm50, 1, 0
    %v83 = vsel %vm51, 1, 0
    %v84 = vsel %vm52, 1, 0
    %v85 = vsel %vm53, 1, 0
    %v86 = vsel %vm54, 1, 0
    %v87 = vsel %vm55, 1, 0
    %v88 = vsel %vm56, 1, 0
    %v89 = vsel %vm57, 1, 0
    %v90 = vsel %vm58, 1, 0
    %v91 = vsel %vm59, 1, 0
    %v92 = vsel %vm60, 1, 0
    %v93 = vsel %vm61, 1, 0
    %v94 = vsel %vm62, 1, 0
    %95 = vset.pattern.permute.xlu0 0
    %96 = vperm.xlu0 %95, %v79
    %v97 = vpop.permute.xlu0 %96
    %98 = vset.pattern.permute.xlu0 0
    %99 = vperm.xlu0 %98, %v80
    %v100 = vpop.permute.xlu0 %99
    %101 = vset.pattern.permute.xlu0 0
    %102 = vperm.xlu0 %101, %v81
    %v103 = vpop.permute.xlu0 %102
    %104 = vset.pattern.permute.xlu0 0
    %105 = vperm.xlu0 %104, %v82
    %v106 = vpop.permute.xlu0 %105
    %107 = vset.pattern.permute.xlu0 0
    %108 = vperm.xlu0 %107, %v83
    %v109 = vpop.permute.xlu0 %108
    %110 = vset.pattern.permute.xlu0 0
    %111 = vperm.xlu0 %110, %v84
    %v112 = vpop.permute.xlu0 %111
    %113 = vset.pattern.permute.xlu0 0
    %114 = vperm.xlu0 %113, %v85
    %v115 = vpop.permute.xlu0 %114
    %116 = vset.pattern.permute.xlu0 0
    %117 = vperm.xlu0 %116, %v86
    %v118 = vpop.permute.xlu0 %117
    %119 = vset.pattern.permute.xlu0 0
    %120 = vperm.xlu0 %119, %v87
    %v121 = vpop.permute.xlu0 %120
    %122 = vset.pattern.permute.xlu0 0
    %123 = vperm.xlu0 %122, %v88
    %v124 = vpop.permute.xlu0 %123
    %125 = vset.pattern.permute.xlu0 0
    %126 = vperm.xlu0 %125, %v89
    %v127 = vpop.permute.xlu0 %126
    %128 = vset.pattern.permute.xlu0 0
    %129 = vperm.xlu0 %128, %v90
    %v130 = vpop.permute.xlu0 %129
    %131 = vset.pattern.permute.xlu0 0
    %132 = vperm.xlu0 %131, %v91
    %v133 = vpop.permute.xlu0 %132
    %134 = vset.pattern.permute.xlu0 0
    %135 = vperm.xlu0 %134, %v92
    %v136 = vpop.permute.xlu0 %135
    %137 = vset.pattern.permute.xlu0 0
    %138 = vperm.xlu0 %137, %v93
    %v139 = vpop.permute.xlu0 %138
    %140 = vset.pattern.permute.xlu0 0
    %141 = vperm.xlu0 %140, %v94
    %v142 = vpop.permute.xlu0 %141
    %vm143 = vcmp.eq.s32.totalorder %v97, 1
    %vm144 = vcmp.eq.s32.totalorder %v100, 1
    %vm145 = vcmp.eq.s32.totalorder %v103, 1
    %vm146 = vcmp.eq.s32.totalorder %v106, 1
    %vm147 = vcmp.eq.s32.totalorder %v109, 1
    %vm148 = vcmp.eq.s32.totalorder %v112, 1
    %vm149 = vcmp.eq.s32.totalorder %v115, 1
    %vm150 = vcmp.eq.s32.totalorder %v118, 1
    %vm151 = vcmp.eq.s32.totalorder %v121, 1
    %vm152 = vcmp.eq.s32.totalorder %v124, 1
    %vm153 = vcmp.eq.s32.totalorder %v127, 1
    %vm154 = vcmp.eq.s32.totalorder %v130, 1
    %vm155 = vcmp.eq.s32.totalorder %v133, 1
    %vm156 = vcmp.eq.s32.totalorder %v136, 1
    %vm157 = vcmp.eq.s32.totalorder %v139, 1
    %vm158 = vcmp.eq.s32.totalorder %v142, 1
    %v159 = vsel %vm143, 1, %v63
    %v160 = vsel %vm144, 1, %v64
    %v161 = vsel %vm145, 1, %v65
    %v162 = vsel %vm146, 1, %v66
    %v163 = vsel %vm147, 1, %v67
    %v164 = vsel %vm148, 1, %v68
    %v165 = vsel %vm149, 1, %v69
    %v166 = vsel %vm150, 1, %v70
    %v167 = vsel %vm151, 1, %v71
    %v168 = vsel %vm152, 1, %v72
    %v169 = vsel %vm153, 1, %v73
    %v170 = vsel %vm154, 1, %v74
    %v171 = vsel %vm155, 1, %v75
    %v172 = vsel %vm156, 1, %v76
    %v173 = vsel %vm157, 1, %v77
    %v174 = vsel %vm158, 1, %v78
    %175 = vst [vmem:[#allocation5] sm:$0xff] %v159
    %176 = vst [vmem:[#allocation5 + $0x10] sm:$0xff] %v160
    %177 = vst [vmem:[#allocation5 + $0x20] sm:$0xff] %v161
    %178 = vst [vmem:[#allocation5 + $0x30] sm:$0xff] %v162
    %179 = vst [vmem:[#allocation5 + $0x40] sm:$0xff] %v163
    %180 = vst [vmem:[#allocation5 + $0x50] sm:$0xff] %v164
    %181 = vst [vmem:[#allocation5 + $0x60] sm:$0xff] %v165
    %182 = vst [vmem:[#allocation5 + $0x70] sm:$0xff] %v166
    %183 = vst [vmem:[#allocation5 + $0x80] sm:$0xff] %v167
    %184 = vst [vmem:[#allocation5 + $0x90] sm:$0xff] %v168
    %185 = vst [vmem:[#allocation5 + $0xa0] sm:$0xff] %v169
    %186 = vst [vmem:[#allocation5 + $0xb0] sm:$0xff] %v170
    %187 = vst [vmem:[#allocation5 + $0xc0] sm:$0xff] %v171
    %188 = vst [vmem:[#allocation5 + $0xd0] sm:$0xff] %v172
    %189 = vst [vmem:[#allocation5 + $0xe0] sm:$0xff] %v173
    %190 = vst [vmem:[#allocation5 + $0xf0] sm:$0xff] %v174
    %v191 = vld [vmem:[#allocation2] sm:$0x1]
    %v192 = vld [vmem:[#allocation2 + $0x1] sm:$0x1]
    %v193 = vld [vmem:[#allocation2 + $0x2] sm:$0x1]
    %v194 = vld [vmem:[#allocation2 + $0x3] sm:$0x1]
    %v195 = vld [vmem:[#allocation2 + $0x4] sm:$0x1]
    %v196 = vld [vmem:[#allocation2 + $0x5] sm:$0x1]
    %v197 = vld [vmem:[#allocation2 + $0x6] sm:$0x1]
    %v198 = vld [vmem:[#allocation2 + $0x7] sm:$0x1]
    %v199 = vld [vmem:[#allocation2 + $0x8] sm:$0x1]
    %v200 = vld [vmem:[#allocation2 + $0x9] sm:$0x1]
    %v201 = vld [vmem:[#allocation2 + $0xa] sm:$0x1]
    %v202 = vld [vmem:[#allocation2 + $0xb] sm:$0x1]
    %v203 = vld [vmem:[#allocation2 + $0xc] sm:$0x1]
    %v204 = vld [vmem:[#allocation2 + $0xd] sm:$0x1]
    %v205 = vld [vmem:[#allocation2 + $0xe] sm:$0x1]
    %v206 = vld [vmem:[#allocation2 + $0xf] sm:$0x1]
    %v207 = vperm.slane %v191, 0
    %v208 = vperm.slane %v192, 0
    %v209 = vperm.slane %v193, 0
    %v210 = vperm.slane %v194, 0
    %v211 = vperm.slane %v195, 0
    %v212 = vperm.slane %v196, 0
    %v213 = vperm.slane %v197, 0
    %v214 = vperm.slane %v198, 0
    %v215 = vperm.slane %v199, 0
    %v216 = vperm.slane %v200, 0
    %v217 = vperm.slane %v201, 0
    %v218 = vperm.slane %v202, 0
    %v219 = vperm.slane %v203, 0
    %v220 = vperm.slane %v204, 0
    %v221 = vperm.slane %v205, 0
    %v222 = vperm.slane %v206, 0
    %223 = vst [vmem:[#allocation5 + $0x8] sm:$0xff] %v207
    %224 = vst [vmem:[#allocation5 + $0x18] sm:$0xff] %v208
    %225 = vst [vmem:[#allocation5 + $0x28] sm:$0xff] %v209
    %226 = vst [vmem:[#allocation5 + $0x38] sm:$0xff] %v210
    %227 = vst [vmem:[#allocation5 + $0x48] sm:$0xff] %v211
    %228 = vst [vmem:[#allocation5 + $0x58] sm:$0xff] %v212
    %229 = vst [vmem:[#allocation5 + $0x68] sm:$0xff] %v213
    %230 = vst [vmem:[#allocation5 + $0x78] sm:$0xff] %v214
    %231 = vst [vmem:[#allocation5 + $0x88] sm:$0xff] %v215
    %232 = vst [vmem:[#allocation5 + $0x98] sm:$0xff] %v216
    %233 = vst [vmem:[#allocation5 + $0xa8] sm:$0xff] %v217
    %234 = vst [vmem:[#allocation5 + $0xb8] sm:$0xff] %v218
    %235 = vst [vmem:[#allocation5 + $0xc8] sm:$0xff] %v219
    %236 = vst [vmem:[#allocation5 + $0xd8] sm:$0xff] %v220
    %237 = vst [vmem:[#allocation5 + $0xe8] sm:$0xff] %v221
    %238 = vst [vmem:[#allocation5 + $0xf8] sm:$0xff] %v222
    // Predicated region
    $region18: #{tpu_custom_call.1} parent=1 // pred_check
      _
    $region19: #{tpu_custom_call.1} parent=1 // pred_check_branch
      %240 = sbr.rel (0) target = $region21
    $region20: #{tpu_custom_call.1} parent=1 // pred_region
      %242 = vsyncadd [#allocation4], 0
      %s243 = sshll.u32 [#allocation5], 4
      %s244 = int_to_ptr.vmem [resolvable:$true] %s243
      %s245 = sshll.u32 %s3, 4
      %s246 = int_to_ptr.hbm [resolvable:$true] %s245
      %251 = dma.vmem_to_hbm [thread:$0]  %s244, 4096, %s246, [#allocation4], 256, 256, 16
    $region21: #{tpu_custom_call.1} parent=1 // pred_fallthru
      _
    // Predicated region
    $region22: #{tpu_custom_call.1} parent=1 // pred_check
      _
    $region23: #{tpu_custom_call.1} parent=1 // pred_check_branch
      %253 = sbr.rel (0) target = $region25
    $region24: #{tpu_custom_call.1} parent=1 // pred_region
      %255 = dma.done [#allocation4], 4096
    $region25: #{tpu_custom_call.1} parent=1 // pred_fallthru
      _
    %256 = vsyncpa [#allocation3], 1
    %257 = vsyncpa [#allocation4], 1

</llo_original>
